<compile_context>
chip_gen: v6e
topology: v6e:2x2x1
jax: 0.10.0
libtpu: 0.0.40
codegen_flags: <defaults>
</compile_context>

<pallas_src>
import functools

import jax
import jax.numpy as jnp
from jax import lax
from jax.experimental import pallas as pl
from jax.experimental.pallas import tpu as pltpu


# ------------------------------- glue (JAX) --------------------------------

# TODO(synk): patch extraction (im2col) stays in XLA glue; an in-kernel strided
# gather from the VMEM feature map is possible but unnecessary at these sizes.
def im2col(x, K, stride):
    """x: (B, C, H, W) -> patches (B, C*K*K, Ho*Wo) with (c, ki, kj) channel order."""
    B, C, H, W = x.shape
    Ho = (H - K) // stride + 1
    Wo = (W - K) // stride + 1
    cols = []
    for ki in range(K):
        for kj in range(K):
            cols.append(x[:, :, ki:ki + stride * Ho:stride, kj:kj + stride * Wo:stride])
    p = jnp.stack(cols, axis=2)                       # (B, C, K*K, Ho, Wo)
    return p.reshape(B, C * K * K, Ho * Wo), Ho, Wo


def _choose_b_block(B, cap=4):
    """Batch items per grid step: amortize the ~0.35us/step overhead at larger B,
    but keep >= 2 grid steps whenever B >= 2 so both v7x TensorCores stay busy."""
    if B <= 2:
        return 1
    for cand in range(min(cap, B // 2), 0, -1):
        if B % cand == 0:
            return cand
    return 1


# ----------------------------- Pallas kernels ------------------------------

def _conv_matmul_kernel(w_ref, b_ref, p_ref, o_ref, *, b_blk, apply_relu):
    # per batch item: (C_out, CKK) @ (CKK, Ho*Wo) + bias -> NCHW-flat (C_out, Ho*Wo)
    w = w_ref[...]
    b = b_ref[...]
    for bb in range(b_blk):                                    # static unroll, b_blk small
        acc = jnp.dot(w, p_ref[bb], preferred_element_type=jnp.float32) + b
        if apply_relu:
            acc = jnp.maximum(acc, 0.0)
        o_ref[bb] = acc.astype(o_ref.dtype)


def conv2d_pallas(x, w, b, stride, apply_relu):
    """x: (B, C_in, H, W) NCHW; w: (C_out, C_in, K, K); b: (C_out,) -> (B, C_out, Ho, Wo)."""
    B = x.shape[0]
    C_out, C_in, K, _ = w.shape
    patches, Ho, Wo = im2col(x, K, stride)            # (B, C_in*K*K, Ho*Wo)
    CKK = C_in * K * K
    HW = Ho * Wo
    wt = w.reshape(C_out, CKK)                        # transposed-matmul weight layout
    bt = b.reshape(C_out, 1)
    b_blk = _choose_b_block(B)
    kern = functools.partial(_conv_matmul_kernel, b_blk=b_blk, apply_relu=apply_relu)
    out = pl.pallas_call(
        kern,
        out_shape=jax.ShapeDtypeStruct((B, C_out, HW), jnp.float32),
        grid=(B // b_blk,),
        in_specs=[pl.BlockSpec((C_out, CKK), lambda i: (0, 0)),
                  pl.BlockSpec((C_out, 1), lambda i: (0, 0)),
                  pl.BlockSpec((b_blk, CKK, HW), lambda i: (i, 0, 0))],
        out_specs=pl.BlockSpec((b_blk, C_out, HW), lambda i: (i, 0, 0)),
        compiler_params=pltpu.CompilerParams(dimension_semantics=("parallel",)),
    )(wt, bt, patches)
    return out.reshape(B, C_out, Ho, Wo)


def _primary_digit_kernel(p_ref, w2_ref, b2_ref, wr_ref, r_ref, o_ref, *,
                          b_blk, pc_out, caps_len, n_in, num_iterations, eps):
    """Fused PrimaryCaps conv + squash + u_hat + dynamic routing (b_blk items/step).

    p_ref : (b_blk, HW2, CKK2)        lane-dense im2col patches of conv1's output
    w2_ref: (CKK2, pc_out*caps_len)   PrimaryCaps conv weight, columns ordered (pc, l)
    b2_ref: (1, pc_out*caps_len)      PrimaryCaps conv bias, same column order
    wr_ref: (L_in, N_in, M)           wr[l, n, j*L_out+o] = W_digit[n, j, o, l]
    r_ref : (M, M)                    0/1 same-output-capsule matrix (hoisted constant)
    o_ref : (b_blk, 1, M)             routed digit capsules, (j, o) flattened on lanes
    """
    w2 = w2_ref[...]
    b2 = b2_ref[...]
    r = r_ref[...]
    inv_n_in = 1.0 / n_in

    for bb in range(b_blk):                                    # static unroll
        # PrimaryCaps conv as a lane-dense matmul: (HW2, CKK2) @ (CKK2, pc_out*L_in).
        res = jnp.dot(p_ref[bb], w2, preferred_element_type=jnp.float32) + b2
        # Rearrange to capsules (N_in, L_in): caps[pc*HW2 + hw, l] = res[hw, pc*L_in + l]
        # (static lane slices + sublane concat only; no in-kernel transpose).
        caps_pre = jnp.concatenate(
            [res[:, pc * caps_len:(pc + 1) * caps_len] for pc in range(pc_out)],
            axis=0)                                            # (N_in, L_in)

        # PrimaryCaps squash over the capsule axis (per component l), as in the module.
        # eps keeps a zero-norm capsule finite (reference would NaN there) -- deliberate.
        sq = jnp.sum(caps_pre * caps_pre, axis=0, keepdims=True)            # (1, L_in)
        caps = caps_pre * (sq * pl.reciprocal(1.0 + sq, approx=False)
                           * lax.rsqrt(sq + eps))

        # u_hat[n, j*L_out+o] = sum_l caps[n, l] * W[n, j, o, l]  (lane-dense VPU FMAs)
        u = caps[:, 0:1] * wr_ref[0]
        for l in range(1, caps_len):
            u = u + caps[:, l:l + 1] * wr_ref[l]                            # (N_in, M)

        # ---- dynamic routing ----
        # Iteration 1: b_ij == 0 => softmax over input capsules is uniform 1/N_in.
        s = jnp.sum(u, axis=0, keepdims=True) * inv_n_in                    # (1, M)
        sqr = jnp.dot(s * s, r, preferred_element_type=jnp.float32)         # ||s_j||^2 repl.
        v = s * (sqr * pl.reciprocal(1.0 + sqr, approx=False) * lax.rsqrt(sqr + eps))
        b_ij = None
        for it in range(2, num_iterations + 1):
            vsum = jnp.dot(v, r, preferred_element_type=jnp.float32)        # sum_o v_j repl.
            b_ij = u * vsum if b_ij is None else b_ij + u * vsum
            mx = jnp.max(b_ij, axis=0, keepdims=True)
            e = jnp.exp(b_ij - mx)
            c = e * pl.reciprocal(jnp.sum(e, axis=0, keepdims=True), approx=False)
            s = jnp.sum(c * u, axis=0, keepdims=True)                       # (1, M)
            sqr = jnp.dot(s * s, r, preferred_element_type=jnp.float32)
            v = s * (sqr * pl.reciprocal(1.0 + sqr, approx=False) * lax.rsqrt(sqr + eps))
        o_ref[bb] = v


def primary_digit_pallas(h, conv2_w, conv2_b, W_digit, *, caps_len, stride=2,
                         num_iterations=3):
    """h: (B, C1, H1, W1) conv1 output -> routed digit capsules (B, N_out, L_out)."""
    B = h.shape[0]
    C2, C1, K2, _ = conv2_w.shape
    pc_out = C2 // caps_len
    patches, H2, W2 = im2col(h, K2, stride)                    # (B, CKK2, HW2)
    CKK2 = C1 * K2 * K2
    HW2 = H2 * W2
    patches_t = jnp.transpose(patches, (0, 2, 1))              # (B, HW2, CKK2) lane-dense

    N_in, N_out, L_out, L_in = W_digit.shape
    assert L_in == caps_len and N_in == pc_out * HW2
    M = N_out * L_out

    # PrimaryCaps conv weight/bias with columns ordered (pc, l) so the in-kernel
    # matmul result maps straight onto capsules (no in-kernel transpose).
    w2_col = jnp.transpose(conv2_w.reshape(caps_len, pc_out, CKK2),
                           (2, 1, 0)).reshape(CKK2, C2)
    b2_col = jnp.transpose(conv2_b.reshape(caps_len, pc_out), (1, 0)).reshape(1, C2)
    # u_hat weights: wr[l, n, j*L_out+o] = W[n, j, o, l]
    w_r = jnp.transpose(W_digit, (3, 0, 1, 2)).reshape(L_in, N_in, M)
    # Constant 0/1 "same output capsule" matrix, built once and kept VMEM-resident.
    r = (jnp.arange(M, dtype=jnp.int32)[:, None] // L_out ==
         jnp.arange(M, dtype=jnp.int32)[None, :] // L_out).astype(jnp.float32)

    b_blk = _choose_b_block(B)
    kern = functools.partial(_primary_digit_kernel, b_blk=b_blk, pc_out=pc_out,
                             caps_len=caps_len, n_in=N_in,
                             num_iterations=num_iterations, eps=1e-9)
    out = pl.pallas_call(
        kern,
        out_shape=jax.ShapeDtypeStruct((B, 1, M), jnp.float32),
        grid=(B // b_blk,),
        in_specs=[pl.BlockSpec((b_blk, HW2, CKK2), lambda i: (i, 0, 0)),
                  pl.BlockSpec((CKK2, C2), lambda i: (0, 0)),
                  pl.BlockSpec((1, C2), lambda i: (0, 0)),
                  pl.BlockSpec((L_in, N_in, M), lambda i: (0, 0, 0)),
                  pl.BlockSpec((M, M), lambda i: (0, 0))],
        out_specs=pl.BlockSpec((b_blk, 1, M), lambda i: (i, 0, 0)),
        compiler_params=pltpu.CompilerParams(dimension_semantics=("parallel",)),
    )(patches_t, w2_col, b2_col, w_r, r)
    return out.reshape(B, N_out, L_out)


# ------------------------------ forward pass --------------------------------

def capsnet_forward(x, params, caps_len=8, num_iterations=3):
    # ConvLayer: conv + ReLU (NCHW in / NCHW-flat out, written directly by the kernel).
    h = conv2d_pallas(x, params["conv1_w"], params["conv1_b"], stride=1, apply_relu=True)
    # Fused PrimaryCaps conv + squash + u_hat + dynamic routing (single pallas_call).
    return primary_digit_pallas(h, params["conv2_w"], params["conv2_b"],
                                params["W_digit"], caps_len=caps_len, stride=2,
                                num_iterations=num_iterations)


def capsnet_reference(x, params, caps_len=8, num_iterations=3):
    """Pure-JAX reference faithful to the PyTorch module."""
    def conv(x, w, b, stride):
        y = jax.lax.conv_general_dilated(
            x, w, (stride, stride), "VALID",
            dimension_numbers=("NCHW", "OIHW", "NCHW"),
            precision=jax.lax.Precision.HIGHEST)
        return y + b[None, :, None, None]

    h = jax.nn.relu(conv(x, params["conv1_w"], params["conv1_b"], 1))
    p = conv(h, params["conv2_w"], params["conv2_b"], 2)
    B = p.shape[0]
    caps = p.reshape(B, caps_len, -1)
    sq = jnp.sum(caps ** 2, axis=-1, keepdims=True)
    caps = sq * caps / ((1.0 + sq) * jnp.sqrt(sq))
    caps = jnp.transpose(caps, (0, 2, 1))
    u_hat = jnp.einsum("bil,ijkl->bijk", caps, params["W_digit"],
                       precision=jax.lax.Precision.HIGHEST)
    b_ij = jnp.zeros_like(u_hat)
    v = None
    for it in range(1, num_iterations + 1):
        c = jax.nn.softmax(b_ij, axis=1)
        s = jnp.sum(c * u_hat, axis=1, keepdims=True)
        sqn = jnp.sum(s ** 2, axis=-1, keepdims=True)
        v = sqn * s / ((1.0 + sqn) * jnp.sqrt(sqn))
        if it < num_iterations:
            b_ij = b_ij + u_hat * jnp.sum(v, axis=-1, keepdims=True)
    return v[:, 0]


# --------------------------------- main -------------------------------------

if __name__ == "__main__":
    key = jax.random.PRNGKey(0)
    k = jax.random.split(key, 6)

    # Small config consistent with the module's structure:
    B, C_in, H, W = 2, 1, 16, 16
    C1, K1 = 32, 5                  # ConvLayer: 32 channels, 5x5, stride 1
    caps_len, pc_out, K2 = 8, 4, 5  # PrimaryCaps: 4*8=32 channels, 5x5, stride 2
    N_out, L_out = 10, 16           # DigitCaps
    H1 = H - K1 + 1                 # 12
    H2 = (H1 - K2) // 2 + 1         # 4
    N_in = pc_out * H2 * H2         # 64 primary capsules

    params = {
        "conv1_w": jax.random.normal(k[0], (C1, C_in, K1, K1), jnp.float32) / (K1 * K1) ** 0.5,
        "conv1_b": 0.1 * jax.random.normal(k[1], (C1,), jnp.float32),
        "conv2_w": jax.random.normal(k[2], (pc_out * caps_len, C1, K2, K2), jnp.float32)
                   / (C1 * K2 * K2) ** 0.5,
        "conv2_b": 0.1 * jax.random.normal(k[3], (pc_out * caps_len,), jnp.float32),
        "W_digit": jax.random.normal(k[4], (N_in, N_out, L_out, caps_len), jnp.float32),
    }
    x = jax.random.normal(k[5], (B, C_in, H, W), jnp.float32)

    out = jax.block_until_ready(capsnet_forward(x, params, caps_len=caps_len))
    assert out.shape == (B, N_out, L_out)
    assert bool(jnp.all(jnp.isfinite(out)))

    ref = jax.block_until_ready(capsnet_reference(x, params, caps_len=caps_len))
    assert bool(jnp.allclose(out, ref, atol=5e-3, rtol=5e-3)), float(jnp.max(jnp.abs(out - ref)))

    print("KERNEL_OK")
</pallas_src>

<mosaic_0001>
module attributes {stable_mosaic.version = 11 : i64} {
  func.func @_conv_matmul_kernel(%arg0: i32, %arg1: memref<32x25xf32, #tpu.memory_space<vmem>>, %arg2: memref<32x1xf32, #tpu.memory_space<vmem>>, %arg3: memref<1x25x144xf32, #tpu.memory_space<vmem>>, %arg4: memref<1x32x144xf32, #tpu.memory_space<vmem>>) attributes {dimension_semantics = [#tpu.dimension_semantics<parallel>], iteration_bounds = array<i64: 2>, scalar_prefetch = 0 : i64, scratch_operands = 0 : i64, tpu.core_type = #tpu.core_type<tc>, window_params = [{pipeline_mode = #tpu.pipeline_mode<synchronous>, transform_indices = @transform_0, window_bounds = array<i64: 32, 25>}, {pipeline_mode = #tpu.pipeline_mode<synchronous>, transform_indices = @transform_1, window_bounds = array<i64: 32, 1>}, {transform_indices = @transform_2, window_bounds = array<i64: 1, 25, 144>}, {transform_indices = @transform_3, window_bounds = array<i64: 1, 32, 144>}]} {
    %c0 = arith.constant 0 : index
    %c0_0 = arith.constant 0 : index
    %0 = vector.load %arg1[%c0, %c0_0] : memref<32x25xf32, #tpu.memory_space<vmem>>, vector<32x25xf32>
    %c0_1 = arith.constant 0 : index
    %c0_2 = arith.constant 0 : index
    %1 = vector.load %arg2[%c0_1, %c0_2] : memref<32x1xf32, #tpu.memory_space<vmem>>, vector<32x1xf32>
    %c0_3 = arith.constant 0 : index
    %c0_4 = arith.constant 0 : index
    %c0_5 = arith.constant 0 : index
    %2 = vector.load %arg3[%c0_3, %c0_4, %c0_5] : memref<1x25x144xf32, #tpu.memory_space<vmem>>, vector<1x25x144xf32>
    %3 = vector.shape_cast %2 : vector<1x25x144xf32> to vector<25x144xf32>
    %cst = arith.constant dense<0.000000e+00> : vector<32x144xf32>
    %4 = tpu.matmul %0, %3, %cst {dimension_numbers = #tpu.dot_dimension_numbers<[1], [0], [0], [1], [0, 0, 1, 1], [], []>} : vector<32x25xf32>, vector<25x144xf32>, vector<32x144xf32> -> vector<32x144xf32>
    %5 = vector.broadcast %1 : vector<32x1xf32> to vector<32x144xf32>
    %6 = arith.addf %4, %5 : vector<32x144xf32>
    %cst_6 = arith.constant 0.000000e+00 : f32
    %7 = vector.broadcast %cst_6 : f32 to vector<32x144xf32>
    %8 = arith.maximumf %6, %7 : vector<32x144xf32>
    %c0_7 = arith.constant 0 : index
    %c0_8 = arith.constant 0 : index
    %c0_9 = arith.constant 0 : index
    %9 = vector.load %arg4[%c0_7, %c0_8, %c0_9] : memref<1x32x144xf32, #tpu.memory_space<vmem>>, vector<1x32x144xf32>
    %10 = vector.shape_cast %9 : vector<1x32x144xf32> to vector<32x144xf32>
    %11 = vector.shape_cast %8 : vector<32x144xf32> to vector<1x32x144xf32>
    tpu.vector_store %arg4[%c0_7, %c0_8, %c0_9], %11 {strides = array<i32>} : memref<1x32x144xf32, #tpu.memory_space<vmem>>, vector<1x32x144xf32>,
    return
  }
  func.func @transform_0(%arg0: i32) -> (i32, i32) {
    %c0_i32 = arith.constant 0 : i32
    %c0_i32_0 = arith.constant 0 : i32
    %c0_i32_1 = arith.constant 0 : i32
    return %c0_i32, %c0_i32_0 : i32, i32
  }
  func.func @transform_1(%arg0: i32) -> (i32, i32) {
    %c0_i32 = arith.constant 0 : i32
    %c0_i32_0 = arith.constant 0 : i32
    %c0_i32_1 = arith.constant 0 : i32
    return %c0_i32, %c0_i32_0 : i32, i32
  }
  func.func @transform_2(%arg0: i32) -> (i32, i32, i32) {
    %c0_i32 = arith.constant 0 : i32
    %c0_i32_0 = arith.constant 0 : i32
    %c0_i32_1 = arith.constant 0 : i32
    return %arg0, %c0_i32, %c0_i32_0 : i32, i32, i32
  }
  func.func @transform_3(%arg0: i32) -> (i32, i32, i32) {
    %c0_i32 = arith.constant 0 : i32
    %c0_i32_0 = arith.constant 0 : i32
    %c0_i32_1 = arith.constant 0 : i32
    return %arg0, %c0_i32, %c0_i32_0 : i32, i32, i32
  }
}

</mosaic_0001>

<llo_original>
// kernel: tpu_custom_call.1
$region0: #{tpu_custom_call.1}
  #allocation0 [shape = 'u32[]', space=smem, size = 0x4, offset = 0x4, fixed_abs, tag = 'smem constant byte address 0x4 - core index']
  #allocation1 [shape = 'u32[144,128]{1,0:T(1,128)}', space=vmem, size = 0x12000, scoped, tag = 'internal scratch']
  %s0 = inlined_call_operand.vmem [shape: f32[32,25], index: 0, kind: input, shape index: {}]
  %s1 = inlined_call_operand.vmem [shape: f32[32,1], index: 1, kind: input, shape index: {}]
  %s2 = inlined_call_operand.vmem [shape: f32[2,25,144], index: 2, kind: input, shape index: {}]
  %s3 = inlined_call_operand.hbm [shape: f32[2,32,144], index: 3, kind: output, shape index: {}]
  %s4 = sld [smem:[#allocation0]]
  $region45: #{tpu_custom_call.1} parent=0
    _
  %s6 = ssub.s32 1, %s4
  %s7 = scalar_select 0, %s6, %s4
  $region1: #{tpu_custom_call.1} parent=0
    #allocation2 [shape = 'u8[65536]{0}', space=vmem, size = 0x10000, scoped, tag = 'output window, operand 0']
    #allocation3 [shape = 's32[2]{0}', space=sflag, size = 0x8, scoped, tag = 'scoped memory for tpu_custom_call.1']
    %8 = vsyncpa [#allocation3], 0
    %s9 = scalar_lea.sflag [#allocation3], 1
    %10 = vsyncpa %s9, 0
    loop: start=0, step=1, limit=4
    $region2: #{tpu_custom_call.1} parent=1 // loop_pre_header
      _
    $region3: #{tpu_custom_call.1} parent=1 // loop_header
      %s12 = sphi 0, %s16
      %p13 = scmp.ge.s32.totalorder %s12, 4
      %s20 = sphi 0, %s20
      %s22 = sphi 0, %s20
      %s23 = sphi 0, %s22
      %s37 = sphi 0, %s23
      %s41 = sphi 0, %s41
      %s43 = sphi 0, %s41
      %s44 = sphi 0, %s43
      %s58 = sphi 0, %s44
      %s64 = sphi 0, %s66
      %s67 = sphi 0, %s64
      %s68 = sphi 0, %s67
      %s84 = sphi 0, %s68
      %s90 = sphi 0, %s92
      %s93 = sphi 0, %s90
      %s94 = sphi 0, %s93
      %s110 = sphi 0, %s94
    $region4: #{tpu_custom_call.1} parent=1 // loop_header_branch
      %15 = sbr.rel (%p13) target = $region8
    $region5: #{tpu_custom_call.1} parent=1 // loop_body
      %s17 = ssub.s32 %s12, 1
      %s18 = ssub.s32 %s12, 2
      %s19 = sadd.s32 %s12, 1
      %s21 = sadd.s32 %s20, 1
      %p24 = scmp.eq.s32.totalorder %s12, 1
      %p25 = scmp.ne.s32.totalorder %s20, %s22
      %p26 = scmp.eq.s32.totalorder %s12, 0
      %p27 = por %p25, %p26
      %p28 = scmp.ne.s32.totalorder %s20, %s22
      %p29 = scmp.eq.s32.totalorder %s17, 1
      %p30 = por %p28, %p29
      %p31 = scmp.ne.s32.totalorder %s22, %s23
      %p32 = scmp.eq.s32.totalorder %s17, 0
      %p33 = por %p31, %p32
      %p34 = scmp.ne.s32.totalorder %s22, %s23
      %p35 = scmp.eq.s32.totalorder %s18, 1
      %p36 = por %p34, %p35
      %p38 = scmp.ne.s32.totalorder %s23, %s37
      %p39 = scmp.eq.s32.totalorder %s18, 0
      %p40 = por %p38, %p39
      %s42 = sadd.s32 %s41, 1
      %p45 = scmp.eq.s32.totalorder %s12, 1
      %p46 = scmp.ne.s32.totalorder %s41, %s43
      %p47 = scmp.eq.s32.totalorder %s12, 0
      %p48 = por %p46, %p47
      %p49 = scmp.ne.s32.totalorder %s41, %s43
      %p50 = scmp.eq.s32.totalorder %s17, 1
      %p51 = por %p49, %p50
      %p52 = scmp.ne.s32.totalorder %s43, %s44
      %p53 = scmp.eq.s32.totalorder %s17, 0
      %p54 = por %p52, %p53
      %p55 = scmp.ne.s32.totalorder %s43, %s44
      %p56 = scmp.eq.s32.totalorder %s18, 1
      %p57 = por %p55, %p56
      %p59 = scmp.ne.s32.totalorder %s44, %s58
      %p60 = scmp.eq.s32.totalorder %s18, 0
      %p61 = por %p59, %p60
      %s62 = ssub.s32 %s12, %s19
      %p63 = scmp.eq.s32.totalorder %s62, 0
      %s65 = sadd.s32 %s64, 1
      %s66 = scalar_select %p63, %s64, %s65
      %p69 = pneg %p63
      %p70 = scmp.eq.s32.totalorder %s12, 1
      %p71 = por %p69, %p70
      %p72 = scmp.ne.s32.totalorder %s64, %s67
      %p73 = scmp.eq.s32.totalorder %s12, 0
      %p74 = por %p72, %p73
      %p75 = scmp.ne.s32.totalorder %s64, %s67
      %p76 = scmp.eq.s32.totalorder %s17, 1
      %p77 = por %p75, %p76
      %p78 = scmp.ne.s32.totalorder %s67, %s68
      %p79 = scmp.eq.s32.totalorder %s17, 0
      %p80 = por %p78, %p79
      %p81 = scmp.ne.s32.totalorder %s67, %s68
      %p82 = scmp.eq.s32.totalorder %s18, 1
      %p83 = por %p81, %p82
      %p85 = scmp.ne.s32.totalorder %s68, %s84
      %p86 = scmp.eq.s32.totalorder %s18, 0
      %p87 = por %p85, %p86
      %s88 = ssub.s32 %s12, %s19
      %p89 = scmp.eq.s32.totalorder %s88, 0
      %s91 = sadd.s32 %s90, 1
      %s92 = scalar_select %p89, %s90, %s91
      %p95 = pneg %p89
      %p96 = scmp.eq.s32.totalorder %s12, 1
      %p97 = por %p95, %p96
      %p98 = scmp.ne.s32.totalorder %s90, %s93
      %p99 = scmp.eq.s32.totalorder %s12, 0
      %p100 = por %p98, %p99
      %p101 = scmp.ne.s32.totalorder %s90, %s93
      %p102 = scmp.eq.s32.totalorder %s17, 1
      %p103 = por %p101, %p102
      %p104 = scmp.ne.s32.totalorder %s93, %s94
      %p105 = scmp.eq.s32.totalorder %s17, 0
      %p106 = por %p104, %p105
      %p107 = scmp.ne.s32.totalorder %s93, %s94
      %p108 = scmp.eq.s32.totalorder %s18, 1
      %p109 = por %p107, %p108
      %p111 = scmp.ne.s32.totalorder %s94, %s110
      %p112 = scmp.eq.s32.totalorder %s18, 0
      %p113 = por %p111, %p112
      %p114 = scmp.le.s32.totalorder 1, %s12
      %p115 = scmp.lt.s32.totalorder %s12, 3
      %p116 = pnand %p114, %p115
      %p117 = pneg %p116
      // Predicated region
      $region9: #{tpu_custom_call.1} parent=5 // pred_check
        _
      $region10: #{tpu_custom_call.1} parent=5 // pred_check_branch
        %119 = sbr.rel (%p116) target = $region12
      $region11: #{tpu_custom_call.1} parent=5 // pred_region
        %s120 = ssub.s32 %s12, 1
        // Predicated region
        $region13: #{tpu_custom_call.1} parent=11 // pred_check
          %p121 = pneg %p33
        $region14: #{tpu_custom_call.1} parent=11 // pred_check_branch
          %123 = sbr.rel (%p121) target = $region16
        $region15: #{tpu_custom_call.1} parent=11 // pred_region
          _
        $region16: #{tpu_custom_call.1} parent=11 // pred_fallthru
          _
        // Predicated region
        $region17: #{tpu_custom_call.1} parent=11 // pred_check
          %p124 = pneg %p54
        $region18: #{tpu_custom_call.1} parent=11 // pred_check_branch
          %126 = sbr.rel (%p124) target = $region20
        $region19: #{tpu_custom_call.1} parent=11 // pred_region
          _
        $region20: #{tpu_custom_call.1} parent=11 // pred_fallthru
          _
      $region12: #{tpu_custom_call.1} parent=5 // pred_fallthru
        _
      %p127 = scmp.lt.s32.totalorder %s12, 2
      // Predicated region
      $region21: #{tpu_custom_call.1} parent=5 // pred_check
        %p128 = pneg %p127
      $region22: #{tpu_custom_call.1} parent=5 // pred_check_branch
        %130 = sbr.rel (%p128) target = $region24
      $region23: #{tpu_custom_call.1} parent=5 // pred_region
        // Predicated region
        $region25: #{tpu_custom_call.1} parent=23 // pred_check
          %p131 = pneg %p74
        $region26: #{tpu_custom_call.1} parent=23 // pred_check_branch
          %133 = sbr.rel (%p131) target = $region28
        $region27: #{tpu_custom_call.1} parent=23 // pred_region
          %p134 = scmp.lt.s32.totalorder %s12, 1
          %s135 = scalar_select %p134, %s12, 1
          %s136 = smul.addr %s135, 8
          %s137 = smul.addr %s136, 8
          %s138 = scalar_lea.vmem %s2, %s137
        $region28: #{tpu_custom_call.1} parent=23 // pred_fallthru
          _
      $region24: #{tpu_custom_call.1} parent=5 // pred_fallthru
        _
      %p139 = scmp.le.s32.totalorder 1, %s12
      %p140 = scmp.lt.s32.totalorder %s12, 3
      %p141 = pnand %p139, %p140
      %p142 = pneg %p141
      // Predicated region
      $region29: #{tpu_custom_call.1} parent=5 // pred_check
        _
      $region30: #{tpu_custom_call.1} parent=5 // pred_check_branch
        %144 = sbr.rel (%p141) target = $region32
      $region31: #{tpu_custom_call.1} parent=5 // pred_region
        %s145 = ssub.s32 %s12, 1
        %p146 = pneg %p33
        %p147 = pneg %p30
        %p148 = pneg %p54
        %p149 = pneg %p51
        %p150 = scmp.lt.s32.totalorder %s17, 1
        %s151 = scalar_select %p150, %s17, 1
        %s152 = smul.addr %s151, 8
        %s153 = smul.addr %s152, 8
        %s154 = scalar_lea.vmem %s2, %s153
        %p155 = pneg %p80
        %p156 = pneg %p77
        %p157 = pneg %p106
        %p158 = pneg %p103
        %s159 = sand.u32 %s93, 1
        %s160 = scalar_lea.sflag [#allocation3], %s159
        %s161 = sand.u32 %s93, 1
        %s162 = smul.addr %s161, 64
        %s163 = scalar_lea.vmem [#allocation2], %s162
        %p164 = scmp.lt.s32.totalorder %s17, 1
        %s165 = scalar_select %p164, %s17, 1
        %s166 = smul.addr %s165, 8
        %s167 = smul.addr %s166, 8
        %s168 = scalar_lea.vmem %s2, %s167
        %v169 = vld [vmem:[%s0] sm:$0xff]
        %v170 = vld [vmem:[%s0 + $0x8] sm:$0xff]
        %v171 = vld [vmem:[%s0 + $0x10] sm:$0xff]
        %v172 = vld [vmem:[%s0 + $0x18] sm:$0xff]
        %v173 = vld [vmem:[%s1] sm:$0xff]
        %v174 = vld [vmem:[%s1 + $0x8] sm:$0xff]
        %v175 = vld [vmem:[%s1 + $0x10] sm:$0xff]
        %v176 = vld [vmem:[%s1 + $0x18] sm:$0xff]
        %v177 = vld [vmem:[%s168] sm:$0xff]
        %v178 = vld [vmem:[%s168 + $0x8] sm:$0xff]
        %v179 = vld [vmem:[%s168 + $0x10] sm:$0xff]
        %v180 = vld [vmem:[%s168 + $0x18] sm:$0xff]
        %v181 = vld [vmem:[%s168 + $0x20] sm:$0xff]
        %v182 = vld [vmem:[%s168 + $0x28] sm:$0xff]
        %v183 = vld [vmem:[%s168 + $0x30] sm:$0x1]
        %v184 = vld [vmem:[%s168 + $0x38] sm:$0x1]
        %186 = vset.pattern.permute.xlu0 0
        %187 = vperm.xlu0 %186, %v173
        %v188 = vpop.permute.xlu0 %187
        %191 = vset.pattern.permute.xlu0 0
        %192 = vperm.xlu0 %191, %v174
        %v193 = vpop.permute.xlu0 %192
        %196 = vset.pattern.permute.xlu0 0
        %197 = vperm.xlu0 %196, %v175
        %v198 = vpop.permute.xlu0 %197
        %201 = vset.pattern.permute.xlu0 0
        %202 = vperm.xlu0 %201, %v176
        %v203 = vpop.permute.xlu0 %202
        %vm205 = vcmask 203776
        %v207 = vsel %vm205, %v169, 0
        %v210 = vsel %vm205, %v170, 0
        %v213 = vsel %vm205, %v171, 0
        %v216 = vsel %vm205, %v172, 0
        %vm218 = vcmask 1040384
        %v220 = vsel %vm218, %v183, 0
        %v223 = vsel %vm218, %v184, 0
        %225 = vmatprep.subr.mxu0 0.0
        %226 = vmatpush1.msra.mxu0 0.0
        %227 = vmatprep.subr.mxu0 0.0
        %228 = vmatpush1.msra.mxu0 0.0
        %229 = vmatprep.subr.mxu0 0.0
        %230 = vmatpush1.msra.mxu0 0.0
        %231 = vmatprep.subr.mxu0 0.0
        %232 = vmatpush1.msra.mxu0 0.0
        %233 = vmatprep.subr.mxu0 0.0
        %234 = vmatpush1.msra.mxu0 0.0
        %235 = vmatprep.subr.mxu0 0.0
        %236 = vmatpush1.msra.mxu0 0.0
        %237 = vmatprep.subr.mxu0 0.0
        %238 = vmatpush1.msra.mxu0 0.0
        %239 = vmatprep.subr.mxu0 0.0
        %240 = vmatpush1.msra.mxu0 0.0
        %241 = vmatprep.subr.mxu0 0.0
        %242 = vmatpush1.msra.mxu0 0.0
        %243 = vmatprep.subr.mxu0 0.0
        %244 = vmatpush1.msra.mxu0 0.0
        %245 = vmatprep.subr.mxu0 0.0
        %246 = vmatpush1.msra.mxu0 0.0
        %247 = vmatprep.subr.mxu0 0.0
        %248 = vmatpush1.msra.mxu0 0.0
        %249 = vmatprep.subr.mxu0 %v223
        %250 = vmatpush1.msra.mxu0 %v220
        %251 = vmatprep.subr.mxu0 %v182
        %252 = vmatpush1.msra.mxu0 %v181
        %253 = vmatprep.subr.mxu0 %v180
        %254 = vmatpush1.msra.mxu0 %v179
        %255 = vmatprep.subr.mxu0 %v178
        %256 = vmatpush1.msra.mxu0 %v177
        %257 = vmatprep.subr.mxu0 0.0
        %258 = vmatpush2.msra.mxu0 0.0
        %259 = vmatprep.subr.mxu0 0.0
        %260 = vmatpush2.msra.mxu0 0.0
        %261 = vmatprep.subr.mxu0 0.0
        %262 = vmatpush2.msra.mxu0 0.0
        %263 = vmatprep.subr.mxu0 0.0
        %264 = vmatpush2.msra.mxu0 0.0
        %265 = vmatprep.subr.mxu0 0.0
        %266 = vmatpush2.msra.mxu0 0.0
        %267 = vmatprep.subr.mxu0 0.0
        %268 = vmatpush2.msra.mxu0 0.0
        %269 = vmatprep.subr.mxu0 0.0
        %270 = vmatpush2.msra.mxu0 0.0
        %271 = vmatprep.subr.mxu0 0.0
        %272 = vmatpush2.msra.mxu0 0.0
        %273 = vmatprep.subr.mxu0 0.0
        %274 = vmatpush2.msra.mxu0 0.0
        %275 = vmatprep.subr.mxu0 0.0
        %276 = vmatpush2.msra.mxu0 0.0
        %277 = vmatprep.subr.mxu0 0.0
        %278 = vmatpush2.msra.mxu0 0.0
        %279 = vmatprep.subr.mxu0 0.0
        %280 = vmatpush2.msra.mxu0 0.0
        %281 = vmatprep.subr.mxu0 0.0
        %282 = vmatpush2.msra.mxu0 0.0
        %283 = vmatprep.subr.mxu0 0.0
        %284 = vmatpush2.msra.mxu0 0.0
        %285 = vmatprep.subr.mxu0 0.0
        %286 = vmatpush2.msra.mxu0 0.0
        %287 = vmatprep.subr.mxu0 0.0
        %288 = vmatpush2.msra.mxu0 0.0
        %289 = vmatprep.mubr.f32.mxu0 0.0
        %290 = vmatmul.mubr.f32.gmra.mxu0 %v207
        %v291 = vpop.f32.mrf.mxu0
        %v292 = vadd.f32 %v188, %v291
        %v293 = vpop.f32.mrf.mxu0
        %v294 = vadd.f32 %v188, %v293
        %295 = vmatprep.mubr.f32.mxu0 0.0
        %296 = vmatmul.mubr.f32.gmra.mxu0 %v210
        %v297 = vpop.f32.mrf.mxu0
        %v298 = vadd.f32 %v193, %v297
        %v299 = vpop.f32.mrf.mxu0
        %v300 = vadd.f32 %v193, %v299
        %301 = vmatprep.mubr.f32.mxu0 0.0
        %302 = vmatmul.mubr.f32.gmra.mxu0 %v213
        %v303 = vpop.f32.mrf.mxu0
        %v304 = vadd.f32 %v198, %v303
        %v305 = vpop.f32.mrf.mxu0
        %v306 = vadd.f32 %v198, %v305
        %307 = vmatprep.mubr.f32.mxu0 0.0
        %308 = vmatmul.mubr.f32.gmra.mxu0 %v216
        %v309 = vpop.f32.mrf.mxu0
        %v310 = vadd.f32 %v203, %v309
        %v311 = vpop.f32.mrf.mxu0
        %v312 = vadd.f32 %v203, %v311
        %313 = vdwg.mxu0
        %v314 = vmax.f32 %v292, 0.0
        %v315 = vmax.f32 %v294, 0.0
        %v316 = vmax.f32 %v298, 0.0
        %v317 = vmax.f32 %v300, 0.0
        %v318 = vmax.f32 %v304, 0.0
        %v319 = vmax.f32 %v306, 0.0
        %v320 = vmax.f32 %v310, 0.0
        %v321 = vmax.f32 %v312, 0.0
        %322 = vst [vmem:[%s163] sm:$0xff] %v314
        %vm323 = vcmask 130048
        %324 = vst.msk [vmem:[%s163 + $0x8] sm:$0xff] %vm323, %v315
        %325 = vst [vmem:[%s163 + $0x10] sm:$0xff] %v316
        %326 = vst.msk [vmem:[%s163 + $0x18] sm:$0xff] %vm323, %v317
        %327 = vst [vmem:[%s163 + $0x20] sm:$0xff] %v318
        %328 = vst.msk [vmem:[%s163 + $0x28] sm:$0xff] %vm323, %v319
        %329 = vst [vmem:[%s163 + $0x30] sm:$0xff] %v320
        %330 = vst.msk [vmem:[%s163 + $0x38] sm:$0xff] %vm323, %v321
        %s331 = sand.u32 %s93, 1
        %s332 = scalar_lea.sflag [#allocation3], %s331
        %s333 = sand.u32 %s93, 1
        %s334 = smul.addr %s333, 64
        %s335 = scalar_lea.vmem [#allocation2], %s334
        // Predicated region
        $region33: #{tpu_custom_call.1} parent=31 // pred_check
          %p336 = pneg %p103
        $region34: #{tpu_custom_call.1} parent=31 // pred_check_branch
          %338 = sbr.rel (%p336) target = $region36
        $region35: #{tpu_custom_call.1} parent=31 // pred_region
          %s340 = ssub.s32 1024, 1024
          %341 = vsyncadd %s332, %s340
          %s342 = smul.addr %s17, 8
          %s343 = smul.addr %s342, 128
          %s344 = scalar_lea.hbm %s3, %s343
          %s345 = sshll.u32 %s335, 4
          %s346 = int_to_ptr.vmem [resolvable:$true] %s345
          %351 = dma.vmem_to_hbm [thread:$0]  %s346, 1024, %s344, %s332, 256, 256, 16
        $region36: #{tpu_custom_call.1} parent=31 // pred_fallthru
          _
      $region32: #{tpu_custom_call.1} parent=5 // pred_fallthru
        _
      %p352 = scmp.le.s32.totalorder 2, %s12
      // Predicated region
      $region37: #{tpu_custom_call.1} parent=5 // pred_check
        %p353 = pneg %p352
      $region38: #{tpu_custom_call.1} parent=5 // pred_check_branch
        %355 = sbr.rel (%p353) target = $region40
      $region39: #{tpu_custom_call.1} parent=5 // pred_region
        %s356 = ssub.s32 %s12, 2
        // Predicated region
        $region41: #{tpu_custom_call.1} parent=39 // pred_check
          %p357 = pneg %p109
        $region42: #{tpu_custom_call.1} parent=39 // pred_check_branch
          %359 = sbr.rel (%p357) target = $region44
        $region43: #{tpu_custom_call.1} parent=39 // pred_region
          %s360 = sand.u32 %s94, 1
          %s361 = scalar_lea.sflag [#allocation3], %s360
          %s362 = sand.u32 %s94, 1
          %s363 = smul.addr %s362, 64
          %s364 = scalar_lea.vmem [#allocation2], %s363
          %365 = dma.done %s361, 1024
        $region44: #{tpu_custom_call.1} parent=39 // pred_fallthru
          _
      $region40: #{tpu_custom_call.1} parent=5 // pred_fallthru
        _
    $region6: #{tpu_custom_call.1} parent=1 // loop_footer
      %s16 = sadd.s32 1, %s12
    $region7: #{tpu_custom_call.1} parent=1 // loop_footer_branch
      %11 = sbr.rel target = $region3
    $region8: #{tpu_custom_call.1} parent=1 // loop_exit
      _
    %366 = vsyncpa [#allocation3], 1
    %s367 = scalar_lea.sflag [#allocation3], 1
    %368 = vsyncpa %s367, 1

</llo_original>
